<compile_context>
chip_gen: v7x
topology: tpu7x:2x2x1
jax: 0.10.0
libtpu: 0.0.40
codegen_flags: <defaults>
</compile_context>

<pallas_src>
import functools
import math

import jax
import jax.numpy as jnp
from jax.experimental import pallas as pl
from jax.experimental.pallas import tpu as pltpu


# Safe on v7x (64 MiB physical VMEM); ample for the tile sizes used here.
# v5e/v6e (128 MiB) could go higher with larger tiles.
_VMEM_LIMIT = 48 * 1024 * 1024


def _pick_tile(dim, preferred, multiple):
    """Largest tile <= preferred that divides `dim` and is a multiple of
    `multiple`.  Never silently returns a block larger than `preferred`
    (the old full-dimension fallback could blow past the VMEM limit)."""
    if dim <= preferred:
        return dim                       # full dim is always a legal block
    start = preferred - (preferred % multiple)
    for t in range(start, 0, -multiple):
        if dim % t == 0:
            return t
    raise ValueError(
        f"no {multiple}-aligned tile <= {preferred} divides dim={dim}; "
        "pad the input to a friendlier size")


# ---------------------------------------------------------------------------
# Fused QKV projection, written directly in head-split layout.
#   x:(B*T, C) f32, w_qkv:(3H, C, hd) bf16, b_qkv:(3H, 1, hd) f32
#   -> (3H, B*T, hd) bf16     (slice j = q/k/v head j of the fused projection)
# ---------------------------------------------------------------------------
def _qkv_proj_kernel(x_ref, w_ref, b_ref, o_ref, acc_ref):
    @pl.when(pl.program_id(2) == 0)
    def _():
        acc_ref[...] = jnp.zeros_like(acc_ref)

    # Cast activations f32 -> bf16 in-kernel (free VPU slot, saves an HBM pass).
    acc_ref[...] += jnp.dot(x_ref[...].astype(jnp.bfloat16), w_ref[...],
                            preferred_element_type=jnp.float32)

    @pl.when(pl.program_id(2) == pl.num_programs(2) - 1)
    def _():
        o_ref[...] = (acc_ref[...] + b_ref[...]).astype(o_ref.dtype)


def _qkv_projection(x2d, w_qkv, b_qkv, *, tm=512, tk=1024):
    M, K = x2d.shape
    nslices, K2, hd = w_qkv.shape
    assert K == K2 and b_qkv.shape == (nslices, 1, hd)
    tm = _pick_tile(M, tm, 8)          # x is f32 -> 8-row sublane packing
    # Collapse the K reduction to one step whenever C fits (GPT-scale C does):
    # keeps the x block resident across the whole head sweep (axis j).
    tk = _pick_tile(K, tk, 128)
    grid = (M // tm, nslices, K // tk)
    return pl.pallas_call(
        _qkv_proj_kernel,
        out_shape=jax.ShapeDtypeStruct((nslices, M, hd), jnp.bfloat16),
        grid=grid,
        in_specs=[
            pl.BlockSpec((tm, tk), lambda i, j, k: (i, k)),            # x
            pl.BlockSpec((None, tk, hd), lambda i, j, k: (j, k, 0)),   # W slice
            pl.BlockSpec((None, 1, hd), lambda i, j, k: (j, 0, 0)),    # b slice
        ],
        out_specs=pl.BlockSpec((None, tm, hd), lambda i, j, k: (j, i, 0)),
        scratch_shapes=[pltpu.VMEM((tm, hd), jnp.float32)],
        compiler_params=pltpu.CompilerParams(
            dimension_semantics=("parallel", "parallel", "arbitrary"),
            vmem_limit_bytes=_VMEM_LIMIT),
    )(x2d, w_qkv, b_qkv)


# ---------------------------------------------------------------------------
# Flash attention (causal, online softmax) on the head-split qkv buffer.
#   qkv: (3H, B*T, hd) bf16  ->  (H, B*T, hd) bf16
# ---------------------------------------------------------------------------
def _flash_attn_kernel(q_ref, k_ref, v_ref, o_ref, m_sc, l_sc, acc_sc,
                       *, tq, tkv, exp_in_bf16):
    qi = pl.program_id(1)
    kj = pl.program_id(2)

    q_start = qi * tq
    kv_start = kj * tkv
    needed = kv_start <= q_start + tq - 1            # some col <= some row
    fully_visible = kv_start + tkv - 1 <= q_start    # every col <= every row

    @pl.when(kj == 0)
    def _():
        m_sc[...] = jnp.full_like(m_sc, -jnp.inf)
        l_sc[...] = jnp.zeros_like(l_sc)
        acc_sc[...] = jnp.zeros_like(acc_sc)

    def update(apply_mask):
        q = q_ref[...]                  # scale already folded into W_q (f32)
        k = k_ref[...]
        v = v_ref[...]
        # Contract the lane (hd) dim of both operands -> no explicit k.T.
        s = jax.lax.dot_general(q, k, (((1,), (1,)), ((), ())),
                                preferred_element_type=jnp.float32)
        if apply_mask:                  # only for diagonal-straddling tiles
            row = q_start + jax.lax.broadcasted_iota(jnp.int32, (tq, tkv), 0)
            col = kv_start + jax.lax.broadcasted_iota(jnp.int32, (tq, tkv), 1)
            s = jnp.where(row >= col, s, -jnp.inf)
        m_prev = m_sc[...]
        m_new = jnp.maximum(m_prev, jnp.max(s, axis=-1, keepdims=True))
        alpha = jnp.exp(m_prev - m_new)
        if exp_in_bf16:
            # v6e/v7x only (bf16 EUP, ~2x exp throughput).  Not for v5e.
            p = jnp.exp((s - m_new).astype(jnp.bfloat16))
            p_sum = jnp.sum(p.astype(jnp.float32), axis=-1, keepdims=True)
            p_dot = p
        else:
            p = jnp.exp(s - m_new)
            p_sum = jnp.sum(p, axis=-1, keepdims=True)
            p_dot = p.astype(v.dtype)
        l_sc[...] = alpha * l_sc[...] + p_sum
        acc_sc[...] = alpha * acc_sc[...] + jnp.dot(
            p_dot, v, preferred_element_type=jnp.float32)
        m_sc[...] = m_new

    @pl.when(fully_visible)
    def _():
        update(apply_mask=False)        # no iota/mask work below the diagonal

    @pl.when(jnp.logical_and(needed, jnp.logical_not(fully_visible)))
    def _():
        update(apply_mask=True)

    @pl.when(kj == pl.num_programs(2) - 1)
    def _():
        o_ref[...] = (acc_sc[...] *
                      pl.reciprocal(l_sc[...], approx=False)).astype(o_ref.dtype)


def _flash_attention(qkv, *, batch, seq_len, n_heads, tq=256, tkv=256,
                     exp_in_bf16=False):
    """qkv: (3H, B*T, hd) bf16 (rows = (b, t) flattened) -> (H, B*T, hd) bf16.
    v5e note: prefer tkv=128 (128-wide MXU, vreg pressure)."""
    nslices, M, hd = qkv.shape
    H = n_heads
    assert nslices == 3 * H and M == batch * seq_len
    tq = _pick_tile(seq_len, tq, 16)     # bf16 -> 16-row sublane packing
    tkv = _pick_tile(seq_len, tkv, 16)
    nq, nkv = seq_len // tq, seq_len // tkv
    grid = (batch * H, nq, nkv)

    def q_map(g, qi, kj):
        return (g % H, (g // H) * nq + qi, 0)

    def kv_map(offset):
        def _map(g, qi, kj):
            # Clamp blocks above the causal diagonal to the last needed block:
            # skipped steps reuse the already-resident block (no re-DMA).
            last = (qi * tq + tq - 1) // tkv
            kv_blk = jnp.minimum(kj, last)
            return (offset * H + g % H, (g // H) * nkv + kv_blk, 0)
        return _map

    kern = functools.partial(_flash_attn_kernel, tq=tq, tkv=tkv,
                             exp_in_bf16=exp_in_bf16)
    return pl.pallas_call(
        kern,
        out_shape=jax.ShapeDtypeStruct((H, M, hd), jnp.bfloat16),
        grid=grid,
        in_specs=[
            pl.BlockSpec((None, tq, hd), q_map),         # q  (slice h)
            pl.BlockSpec((None, tkv, hd), kv_map(1)),    # k  (slice H+h)
            pl.BlockSpec((None, tkv, hd), kv_map(2)),    # v  (slice 2H+h)
        ],
        out_specs=pl.BlockSpec((None, tq, hd), q_map),
        scratch_shapes=[
            pltpu.VMEM((tq, 1), jnp.float32),    # running max
            pltpu.VMEM((tq, 1), jnp.float32),    # running sum
            pltpu.VMEM((tq, hd), jnp.float32),   # output accumulator
        ],
        compiler_params=pltpu.CompilerParams(
            # Uniform batch*head axis is the (megacore) parallel axis; the
            # causally-triangular q / kv axes stay "arbitrary" (v7x balance).
            dimension_semantics=("parallel", "arbitrary", "arbitrary"),
            vmem_limit_bytes=_VMEM_LIMIT),
    )(qkv, qkv, qkv)


# ---------------------------------------------------------------------------
# Output projection, consuming the head-split flash output directly:
#   out[m, :] = sum_h y[h, m, :] @ wp[h] + bp     (head axis == reduction axis)
#   y:(H, B*T, hd) bf16, wp:(H, hd, C) bf16, bp:(1, C) f32 -> (B*T, C)
# ---------------------------------------------------------------------------
def _out_proj_kernel(y_ref, w_ref, b_ref, o_ref, acc_ref):
    h = pl.program_id(2)

    @pl.when(h == 0)
    def _():
        acc_ref[...] = jnp.zeros_like(acc_ref)

    acc_ref[...] += jnp.dot(y_ref[...], w_ref[...],
                            preferred_element_type=jnp.float32)

    @pl.when(h == pl.num_programs(2) - 1)
    def _():
        o_ref[...] = (acc_ref[...] + b_ref[...]).astype(o_ref.dtype)


def _out_projection(y, wp3, bp, out_dtype, *, tm=512, tn=512):
    H, M, hd = y.shape
    H2, hd2, C = wp3.shape
    assert H == H2 and hd == hd2 and bp.shape == (1, C)
    tm = _pick_tile(M, tm, 16)          # y is bf16
    tn = _pick_tile(C, tn, 128)
    grid = (M // tm, C // tn, H)
    return pl.pallas_call(
        _out_proj_kernel,
        out_shape=jax.ShapeDtypeStruct((M, C), out_dtype),
        grid=grid,
        in_specs=[
            pl.BlockSpec((None, tm, hd), lambda i, j, h: (h, i, 0)),   # y head h
            pl.BlockSpec((None, hd, tn), lambda i, j, h: (h, 0, j)),   # wp head h
            pl.BlockSpec((1, tn), lambda i, j, h: (0, j)),             # bias
        ],
        out_specs=pl.BlockSpec((tm, tn), lambda i, j, h: (i, j)),
        scratch_shapes=[pltpu.VMEM((tm, tn), jnp.float32)],
        compiler_params=pltpu.CompilerParams(
            dimension_semantics=("parallel", "parallel", "arbitrary"),
            vmem_limit_bytes=_VMEM_LIMIT),
    )(y, wp3, bp)


# ---------------------------------------------------------------------------
# One-time (weight-load-time) parameter prep + forward pass.
# ---------------------------------------------------------------------------
def prepare_params(wq, wk, wv, wp, bq, bk, bv, bp, n_heads):
    """Fuse QKV, fold 1/sqrt(hd) into the Q weights/bias (in f32), reshape to
    head-split layouts, and cast to bf16 -- all once, outside the forward."""
    C = wq.shape[0]
    assert C % n_heads == 0
    hd = C // n_heads
    scale = 1.0 / math.sqrt(hd)
    w_fused = jnp.concatenate([wq * scale, wk, wv], axis=1)      # (C, 3C) f32
    b_fused = jnp.concatenate([bq * scale, bk, bv], axis=1)      # (1, 3C) f32
    # (3H, C, hd): slice j is the weight of (q|k|v, head) slice j.
    w_qkv = jnp.transpose(w_fused.reshape(C, 3 * n_heads, hd),
                          (1, 0, 2)).astype(jnp.bfloat16)
    b_qkv = b_fused.reshape(3 * n_heads, 1, hd).astype(jnp.float32)
    wp3 = wp.reshape(n_heads, hd, C).astype(jnp.bfloat16)        # (H, hd, C)
    bp2 = bp.astype(jnp.float32)                                 # (1, C)
    return dict(w_qkv=w_qkv, b_qkv=b_qkv, wp=wp3, bp=bp2, n_heads=n_heads)


def causal_self_attention(x, params, *, tq=256, tkv=256, exp_in_bf16=False):
    """minGPT CausalSelfAttention forward (eval mode).  x: (B, T, C) f32."""
    B, T, C = x.shape
    H = params["n_heads"]
    assert C % H == 0
    x2d = x.reshape(B * T, C)                                        # free
    qkv = _qkv_projection(x2d, params["w_qkv"], params["b_qkv"])     # (3H,B*T,hd)
    y = _flash_attention(qkv, batch=B, seq_len=T, n_heads=H,
                         tq=tq, tkv=tkv, exp_in_bf16=exp_in_bf16)    # (H,B*T,hd)
    out = _out_projection(y, params["wp"], params["bp"], x.dtype)    # (B*T, C)
    return out.reshape(B, T, C)


# ---------------------------------------------------------------------------
# Pure-JAX f32 reference mirroring the PyTorch forward (eval mode).
# ---------------------------------------------------------------------------
def _reference(x, wq, wk, wv, wp, bq, bk, bv, bp, n_heads):
    B, T, C = x.shape
    hd = C // n_heads

    def split_heads(t):
        return t.reshape(B, T, n_heads, hd).transpose(0, 2, 1, 3)   # (B,H,T,hd)

    q = split_heads(x @ wq + bq)
    k = split_heads(x @ wk + bk)
    v = split_heads(x @ wv + bv)

    att = jnp.einsum("bhqd,bhkd->bhqk", q, k) * (1.0 / math.sqrt(hd))
    mask = jnp.tril(jnp.ones((T, T), dtype=bool))
    att = jnp.where(mask[None, None], att, -jnp.inf)
    att = jax.nn.softmax(att, axis=-1)
    y = jnp.einsum("bhqk,bhkd->bhqd", att, v)
    y = y.transpose(0, 2, 1, 3).reshape(B, T, C)
    return y @ wp + bp


if __name__ == "__main__":
    B, T, C, N_HEADS = 2, 8, 32, 4      # block_size == T for this example
    key = jax.random.PRNGKey(0)
    ks = jax.random.split(key, 9)

    # Deterministic PyTorch-Linear-style init: U(-1/sqrt(C), 1/sqrt(C)).
    bound = 1.0 / math.sqrt(C)

    def uni(k, shape):
        return jax.random.uniform(k, shape, jnp.float32, -bound, bound)

    x = jax.random.normal(ks[0], (B, T, C), jnp.float32)
    # nn.Linear stores W as (out, in); pre-transpose to (in, out) for the kernel.
    wq = uni(ks[1], (C, C)).T
    wk = uni(ks[2], (C, C)).T
    wv = uni(ks[3], (C, C)).T
    wp = uni(ks[4], (C, C)).T
    bq = uni(ks[5], (1, C))
    bk = uni(ks[6], (1, C))
    bv = uni(ks[7], (1, C))
    bp = uni(ks[8], (1, C))

    params = prepare_params(wq, wk, wv, wp, bq, bk, bv, bp, N_HEADS)

    out = causal_self_attention(x, params)
    out = jax.block_until_ready(out)

    ref = _reference(x, wq, wk, wv, wp, bq, bk, bv, bp, N_HEADS)
    assert out.shape == (B, T, C)
    # bf16 matmul inputs -> loosened tolerance vs the f32 reference.
    assert jnp.allclose(out, ref, atol=2e-2, rtol=2e-2), "mismatch vs reference"

    print("KERNEL_OK")
</pallas_src>

<mosaic_0001>
module attributes {stable_mosaic.version = 11 : i64} {
  func.func @_qkv_proj_kernel(%arg0: i32, %arg1: i32, %arg2: i32, %arg3: memref<16x32xf32, #tpu.memory_space<vmem>>, %arg4: memref<1x32x8xbf16, #tpu.memory_space<vmem>>, %arg5: memref<1x1x8xf32, #tpu.memory_space<vmem>>, %arg6: memref<1x16x8xbf16, #tpu.memory_space<vmem>>, %arg7: memref<16x8xf32, #tpu.memory_space<vmem>>) attributes {dimension_semantics = [#tpu.dimension_semantics<parallel>, #tpu.dimension_semantics<parallel>, #tpu.dimension_semantics<arbitrary>], iteration_bounds = array<i64: 1, 12, 1>, scalar_prefetch = 0 : i64, scratch_operands = 1 : i64, tpu.core_type = #tpu.core_type<tc>, window_params = [{transform_indices = @transform_0, window_bounds = array<i64: 16, 32>}, {transform_indices = @transform_1, window_bounds = array<i64: 1, 32, 8>}, {transform_indices = @transform_2, window_bounds = array<i64: 1, 1, 8>}, {transform_indices = @transform_3, window_bounds = array<i64: 1, 16, 8>}]} {
    %c0_i32 = arith.constant 0 : i32
    %0 = arith.cmpi eq, %arg2, %c0_i32 : i32
    %1 = arith.extui %0 : i1 to i32
    %c0_i32_0 = arith.constant 0 : i32
    %2 = arith.cmpi ne, %1, %c0_i32_0 : i32
    scf.if %2 {
      %cst_11 = arith.constant 0.000000e+00 : f32
      %14 = vector.broadcast %cst_11 : f32 to vector<16x8xf32>
      %c0_12 = arith.constant 0 : index
      %c0_13 = arith.constant 0 : index
      %15 = vector.load %arg7[%c0_12, %c0_13] : memref<16x8xf32, #tpu.memory_space<vmem>>, vector<16x8xf32>
      tpu.vector_store %arg7[%c0_12, %c0_13], %14 {strides = array<i32>} : memref<16x8xf32, #tpu.memory_space<vmem>>, vector<16x8xf32>,
    } else {
    }
    %c0 = arith.constant 0 : index
    %c0_1 = arith.constant 0 : index
    %3 = vector.load %arg7[%c0, %c0_1] : memref<16x8xf32, #tpu.memory_space<vmem>>, vector<16x8xf32>
    %c0_2 = arith.constant 0 : index
    %c0_3 = arith.constant 0 : index
    %4 = vector.load %arg3[%c0_2, %c0_3] : memref<16x32xf32, #tpu.memory_space<vmem>>, vector<16x32xf32>
    %5 = arith.truncf %4 : vector<16x32xf32> to vector<16x32xbf16>
    %c0_4 = arith.constant 0 : index
    %c0_5 = arith.constant 0 : index
    %c0_6 = arith.constant 0 : index
    %6 = vector.load %arg4[%c0_4, %c0_5, %c0_6] : memref<1x32x8xbf16, #tpu.memory_space<vmem>>, vector<1x32x8xbf16>
    %7 = vector.shape_cast %6 : vector<1x32x8xbf16> to vector<32x8xbf16>
    %cst = arith.constant dense<0.000000e+00> : vector<16x8xf32>
    %8 = tpu.matmul %5, %7, %cst {dimension_numbers = #tpu.dot_dimension_numbers<[1], [0], [0], [1], [0, 0, 1, 1], [], []>} : vector<16x32xbf16>, vector<32x8xbf16>, vector<16x8xf32> -> vector<16x8xf32>
    %9 = arith.addf %3, %8 : vector<16x8xf32>
    %c0_7 = arith.constant 0 : index
    %c0_8 = arith.constant 0 : index
    %10 = vector.load %arg7[%c0_7, %c0_8] : memref<16x8xf32, #tpu.memory_space<vmem>>, vector<16x8xf32>
    tpu.vector_store %arg7[%c0_7, %c0_8], %9 {strides = array<i32>} : memref<16x8xf32, #tpu.memory_space<vmem>>, vector<16x8xf32>,
    %c0_i32_9 = arith.constant 0 : i32
    %11 = arith.cmpi eq, %arg2, %c0_i32_9 : i32
    %12 = arith.extui %11 : i1 to i32
    %c0_i32_10 = arith.constant 0 : i32
    %13 = arith.cmpi ne, %12, %c0_i32_10 : i32
    scf.if %13 {
      %c0_11 = arith.constant 0 : index
      %c0_12 = arith.constant 0 : index
      %14 = vector.load %arg7[%c0_11, %c0_12] : memref<16x8xf32, #tpu.memory_space<vmem>>, vector<16x8xf32>
      %c0_13 = arith.constant 0 : index
      %c0_14 = arith.constant 0 : index
      %c0_15 = arith.constant 0 : index
      %15 = vector.load %arg5[%c0_13, %c0_14, %c0_15] : memref<1x1x8xf32, #tpu.memory_space<vmem>>, vector<1x1x8xf32>
      %16 = vector.shape_cast %15 : vector<1x1x8xf32> to vector<1x8xf32>
      %17 = vector.broadcast %16 : vector<1x8xf32> to vector<16x8xf32>
      %18 = arith.addf %14, %17 : vector<16x8xf32>
      %19 = arith.truncf %18 : vector<16x8xf32> to vector<16x8xbf16>
      %c0_16 = arith.constant 0 : index
      %c0_17 = arith.constant 0 : index
      %c0_18 = arith.constant 0 : index
      %20 = vector.load %arg6[%c0_16, %c0_17, %c0_18] : memref<1x16x8xbf16, #tpu.memory_space<vmem>>, vector<1x16x8xbf16>
      %21 = vector.shape_cast %20 : vector<1x16x8xbf16> to vector<16x8xbf16>
      %22 = vector.shape_cast %19 : vector<16x8xbf16> to vector<1x16x8xbf16>
      tpu.vector_store %arg6[%c0_16, %c0_17, %c0_18], %22 {strides = array<i32>} : memref<1x16x8xbf16, #tpu.memory_space<vmem>>, vector<1x16x8xbf16>,
    } else {
    }
    return
  }
  func.func @transform_0(%arg0: i32, %arg1: i32, %arg2: i32) -> (i32, i32) {
    %c0_i32 = arith.constant 0 : i32
    return %arg0, %arg2 : i32, i32
  }
  func.func @transform_1(%arg0: i32, %arg1: i32, %arg2: i32) -> (i32, i32, i32) {
    %c0_i32 = arith.constant 0 : i32
    %c0_i32_0 = arith.constant 0 : i32
    return %arg1, %arg2, %c0_i32 : i32, i32, i32
  }
  func.func @transform_2(%arg0: i32, %arg1: i32, %arg2: i32) -> (i32, i32, i32) {
    %c0_i32 = arith.constant 0 : i32
    %c0_i32_0 = arith.constant 0 : i32
    %c0_i32_1 = arith.constant 0 : i32
    return %arg1, %c0_i32, %c0_i32_0 : i32, i32, i32
  }
  func.func @transform_3(%arg0: i32, %arg1: i32, %arg2: i32) -> (i32, i32, i32) {
    %c0_i32 = arith.constant 0 : i32
    %c0_i32_0 = arith.constant 0 : i32
    return %arg1, %arg0, %c0_i32 : i32, i32, i32
  }
}

</mosaic_0001>

<llo_original>
// kernel: tpu_custom_call.1
$region0: #{tpu_custom_call.1}
  #allocation0 [shape = 'u32[]', space=smem, size = 0x4, offset = 0x4, fixed_abs, tag = 'smem constant byte address 0x4 - core index']
  #allocation1 [shape = 'u32[144,128]{1,0:T(1,128)}', space=vmem, size = 0x12000, scoped, tag = 'internal scratch']
  #allocation2 [shape = 'f32[16,8]{1,0:T(8,128)}', space=vmem, size = 0x2000, scoped, tag = 'scratch operand']
  %s0 = inlined_call_operand.vmem [shape: f32[16,32], index: 0, kind: input, shape index: {}]
  %s1 = inlined_call_operand.vmem [shape: bf16[12,32,8], index: 1, kind: input, shape index: {}]
  %s2 = inlined_call_operand.vmem [shape: f32[12,1,8], index: 2, kind: input, shape index: {}]
  %s3 = inlined_call_operand.vmem [shape: bf16[12,16,8], index: 3, kind: output, shape index: {}]
  %s4 = sld [smem:[#allocation0]]
  $region53: #{tpu_custom_call.1} parent=0
    _
  %s6 = ssub.s32 1, %s4
  %s7 = scalar_select 0, %s6, %s4
  loop: start=0, step=1, limit=14
  $region2: #{tpu_custom_call.1} parent=0 // loop_pre_header
    _
  $region3: #{tpu_custom_call.1} parent=0 // loop_header
    %s9 = sphi 0, %s13
    %p10 = scmp.ge.s32.totalorder %s9, 14
    %s16 = sphi 0, %s35
    %s17 = sphi 0, %s31
    %s18 = sphi 0, %s27
    %s19 = sphi 0, %s16
    %s20 = sphi 0, %s17
    %s21 = sphi 0, %s18
    %s22 = sphi 0, %s19
    %s23 = sphi 0, %s20
    %s24 = sphi 0, %s21
    %s40 = sphi 0, %s42
    %s43 = sphi 0, %s40
    %s44 = sphi 0, %s43
    %s60 = sphi 0, %s44
    %s68 = sphi 0, %s70
    %s71 = sphi 0, %s68
    %s72 = sphi 0, %s71
    %s88 = sphi 0, %s72
    %s94 = sphi 0, %s96
    %s97 = sphi 0, %s94
    %s98 = sphi 0, %s97
    %s114 = sphi 0, %s98
    %s122 = sphi 0, %s124
    %s125 = sphi 0, %s122
    %s126 = sphi 0, %s125
    %s142 = sphi 0, %s126
  $region4: #{tpu_custom_call.1} parent=0 // loop_header_branch
    %12 = sbr.rel (%p10) target = $region8
  $region5: #{tpu_custom_call.1} parent=0 // loop_body
    %s14 = ssub.s32 %s9, 1
    %s15 = ssub.s32 %s9, 2
    %s25 = sadd.s32 1, %s18
    %p26 = scmp.ge.s32.totalorder %s25, 1
    %s27 = scalar_select %p26, 0, %s25
    %s28 = sadd.s32 1, %s17
    %s29 = scalar_select %p26, %s28, %s17
    %p30 = scmp.ge.s32.totalorder %s29, 12
    %s31 = scalar_select %p30, 0, %s29
    %s32 = sadd.s32 1, %s16
    %s33 = scalar_select %p30, %s32, %s16
    %p34 = scmp.ge.s32.totalorder %s33, 1
    %s35 = scalar_select %p34, 0, %s33
    %s36 = ssub.s32 %s16, %s35
    %s37 = ssub.s32 %s18, %s27
    %s38 = sor.u32 %s36, %s37
    %p39 = scmp.eq.s32.totalorder %s38, 0
    %s41 = sadd.s32 %s40, 1
    %s42 = scalar_select %p39, %s40, %s41
    %p45 = pneg %p39
    %p46 = scmp.eq.s32.totalorder %s9, 11
    %p47 = por %p45, %p46
    %p48 = scmp.ne.s32.totalorder %s40, %s43
    %p49 = scmp.eq.s32.totalorder %s9, 0
    %p50 = por %p48, %p49
    %p51 = scmp.ne.s32.totalorder %s40, %s43
    %p52 = scmp.eq.s32.totalorder %s14, 11
    %p53 = por %p51, %p52
    %p54 = scmp.ne.s32.totalorder %s43, %s44
    %p55 = scmp.eq.s32.totalorder %s14, 0
    %p56 = por %p54, %p55
    %p57 = scmp.ne.s32.totalorder %s43, %s44
    %p58 = scmp.eq.s32.totalorder %s15, 11
    %p59 = por %p57, %p58
    %p61 = scmp.ne.s32.totalorder %s44, %s60
    %p62 = scmp.eq.s32.totalorder %s15, 0
    %p63 = por %p61, %p62
    %s64 = ssub.s32 %s17, %s31
    %s65 = ssub.s32 %s18, %s27
    %s66 = sor.u32 %s64, %s65
    %p67 = scmp.eq.s32.totalorder %s66, 0
    %s69 = sadd.s32 %s68, 1
    %s70 = scalar_select %p67, %s68, %s69
    %p73 = pneg %p67
    %p74 = scmp.eq.s32.totalorder %s9, 11
    %p75 = por %p73, %p74
    %p76 = scmp.ne.s32.totalorder %s68, %s71
    %p77 = scmp.eq.s32.totalorder %s9, 0
    %p78 = por %p76, %p77
    %p79 = scmp.ne.s32.totalorder %s68, %s71
    %p80 = scmp.eq.s32.totalorder %s14, 11
    %p81 = por %p79, %p80
    %p82 = scmp.ne.s32.totalorder %s71, %s72
    %p83 = scmp.eq.s32.totalorder %s14, 0
    %p84 = por %p82, %p83
    %p85 = scmp.ne.s32.totalorder %s71, %s72
    %p86 = scmp.eq.s32.totalorder %s15, 11
    %p87 = por %p85, %p86
    %p89 = scmp.ne.s32.totalorder %s72, %s88
    %p90 = scmp.eq.s32.totalorder %s15, 0
    %p91 = por %p89, %p90
    %s92 = ssub.s32 %s17, %s31
    %p93 = scmp.eq.s32.totalorder %s92, 0
    %s95 = sadd.s32 %s94, 1
    %s96 = scalar_select %p93, %s94, %s95
    %p99 = pneg %p93
    %p100 = scmp.eq.s32.totalorder %s9, 11
    %p101 = por %p99, %p100
    %p102 = scmp.ne.s32.totalorder %s94, %s97
    %p103 = scmp.eq.s32.totalorder %s9, 0
    %p104 = por %p102, %p103
    %p105 = scmp.ne.s32.totalorder %s94, %s97
    %p106 = scmp.eq.s32.totalorder %s14, 11
    %p107 = por %p105, %p106
    %p108 = scmp.ne.s32.totalorder %s97, %s98
    %p109 = scmp.eq.s32.totalorder %s14, 0
    %p110 = por %p108, %p109
    %p111 = scmp.ne.s32.totalorder %s97, %s98
    %p112 = scmp.eq.s32.totalorder %s15, 11
    %p113 = por %p111, %p112
    %p115 = scmp.ne.s32.totalorder %s98, %s114
    %p116 = scmp.eq.s32.totalorder %s15, 0
    %p117 = por %p115, %p116
    %s118 = ssub.s32 %s17, %s31
    %s119 = ssub.s32 %s16, %s35
    %s120 = sor.u32 %s118, %s119
    %p121 = scmp.eq.s32.totalorder %s120, 0
    %s123 = sadd.s32 %s122, 1
    %s124 = scalar_select %p121, %s122, %s123
    %p127 = pneg %p121
    %p128 = scmp.eq.s32.totalorder %s9, 11
    %p129 = por %p127, %p128
    %p130 = scmp.ne.s32.totalorder %s122, %s125
    %p131 = scmp.eq.s32.totalorder %s9, 0
    %p132 = por %p130, %p131
    %p133 = scmp.ne.s32.totalorder %s122, %s125
    %p134 = scmp.eq.s32.totalorder %s14, 11
    %p135 = por %p133, %p134
    %p136 = scmp.ne.s32.totalorder %s125, %s126
    %p137 = scmp.eq.s32.totalorder %s14, 0
    %p138 = por %p136, %p137
    %p139 = scmp.ne.s32.totalorder %s125, %s126
    %p140 = scmp.eq.s32.totalorder %s15, 11
    %p141 = por %p139, %p140
    %p143 = scmp.ne.s32.totalorder %s126, %s142
    %p144 = scmp.eq.s32.totalorder %s15, 0
    %p145 = por %p143, %p144
    %p146 = scmp.le.s32.totalorder 1, %s9
    %p147 = scmp.lt.s32.totalorder %s9, 13
    %p148 = pnand %p146, %p147
    %p149 = pneg %p148
    // Predicated region
    $region9: #{tpu_custom_call.1} parent=5 // pred_check
      _
    $region10: #{tpu_custom_call.1} parent=5 // pred_check_branch
      %151 = sbr.rel (%p148) target = $region12
    $region11: #{tpu_custom_call.1} parent=5 // pred_region
      %s152 = ssub.s32 %s9, 1
      // Predicated region
      $region13: #{tpu_custom_call.1} parent=11 // pred_check
        %p153 = pneg %p56
      $region14: #{tpu_custom_call.1} parent=11 // pred_check_branch
        %155 = sbr.rel (%p153) target = $region16
      $region15: #{tpu_custom_call.1} parent=11 // pred_region
        %s156 = smul.u32 2, %s19
        %p157 = scmp.lt.s32.totalorder %s156, 1
        %s158 = scalar_select %p157, %s156, 1
        %p159 = scmp.lt.s32.totalorder %s21, 0
        %s160 = scalar_select %p159, %s21, 0
        %s161 = sadd.s32 %s160, %s158
        %s162 = smul.addr %s161, 8
        %s163 = scalar_lea.vmem %s0, %s162
        %s164 = smul.u32 2, %s19
      $region16: #{tpu_custom_call.1} parent=11 // pred_fallthru
        _
    $region12: #{tpu_custom_call.1} parent=5 // pred_fallthru
      _
    %p165 = scmp.lt.s32.totalorder %s9, 12
    // Predicated region
    $region17: #{tpu_custom_call.1} parent=5 // pred_check
      %p166 = pneg %p165
    $region18: #{tpu_custom_call.1} parent=5 // pred_check_branch
      %168 = sbr.rel (%p166) target = $region20
    $region19: #{tpu_custom_call.1} parent=5 // pred_region
      // Predicated region
      $region21: #{tpu_custom_call.1} parent=19 // pred_check
        %p169 = pneg %p78
      $region22: #{tpu_custom_call.1} parent=19 // pred_check_branch
        %171 = sbr.rel (%p169) target = $region24
      $region23: #{tpu_custom_call.1} parent=19 // pred_region
        %s172 = smul.u32 4, %s18
        %p173 = scmp.lt.s32.totalorder %s17, 11
        %s174 = scalar_select %p173, %s17, 11
        %p175 = scmp.lt.s32.totalorder %s172, 3
        %s176 = scalar_select %p175, %s172, 3
        %s177 = smul.addr %s174, 4
        %s178 = sadd.s32 %s176, %s177
        %s179 = smul.addr %s178, 4
        %s180 = scalar_lea.vmem %s1, %s179
        %s181 = smul.u32 4, %s18
      $region24: #{tpu_custom_call.1} parent=19 // pred_fallthru
        _
      // Predicated region
      $region25: #{tpu_custom_call.1} parent=19 // pred_check
        %p182 = pneg %p104
      $region26: #{tpu_custom_call.1} parent=19 // pred_check_branch
        %184 = sbr.rel (%p182) target = $region28
      $region27: #{tpu_custom_call.1} parent=19 // pred_region
        %p185 = scmp.lt.s32.totalorder %s17, 11
        %s186 = scalar_select %p185, %s17, 11
        %s187 = scalar_lea.vmem %s2, %s186
      $region28: #{tpu_custom_call.1} parent=19 // pred_fallthru
        _
    $region20: #{tpu_custom_call.1} parent=5 // pred_fallthru
      _
    %p188 = scmp.le.s32.totalorder 1, %s9
    %p189 = scmp.lt.s32.totalorder %s9, 13
    %p190 = pnand %p188, %p189
    %p191 = pneg %p190
    // Predicated region
    $region29: #{tpu_custom_call.1} parent=5 // pred_check
      _
    $region30: #{tpu_custom_call.1} parent=5 // pred_check_branch
      %193 = sbr.rel (%p190) target = $region32
    $region31: #{tpu_custom_call.1} parent=5 // pred_region
      %s194 = ssub.s32 %s9, 1
      %s195 = smul.u32 2, %s19
      %p196 = scmp.lt.s32.totalorder %s195, 1
      %s197 = scalar_select %p196, %s195, 1
      %p198 = scmp.lt.s32.totalorder %s21, 0
      %s199 = scalar_select %p198, %s21, 0
      %s200 = sadd.s32 %s199, %s197
      %s201 = smul.addr %s200, 8
      %s202 = scalar_lea.vmem %s0, %s201
      %p203 = pneg %p56
      %p204 = pneg %p53
      %s205 = smul.u32 4, %s21
      %p206 = scmp.lt.s32.totalorder %s20, 11
      %s207 = scalar_select %p206, %s20, 11
      %p208 = scmp.lt.s32.totalorder %s205, 3
      %s209 = scalar_select %p208, %s205, 3
      %s210 = smul.addr %s207, 4
      %s211 = sadd.s32 %s209, %s210
      %s212 = smul.addr %s211, 4
      %s213 = scalar_lea.vmem %s1, %s212
      %p214 = pneg %p84
      %p215 = pneg %p81
      %p216 = scmp.lt.s32.totalorder %s20, 11
      %s217 = scalar_select %p216, %s20, 11
      %s218 = scalar_lea.vmem %s2, %s217
      %p219 = pneg %p110
      %p220 = pneg %p107
      %p221 = pneg %p138
      %p222 = pneg %p135
      %s223 = smul.u32 2, %s19
      %p224 = scmp.lt.s32.totalorder %s20, 11
      %s225 = scalar_select %p224, %s20, 11
      %p226 = scmp.lt.s32.totalorder %s223, 1
      %s227 = scalar_select %p226, %s223, 1
      %s228 = smul.addr %s225, 2
      %s229 = sadd.s32 %s227, %s228
      %s230 = smul.addr %s229, 4
      %s231 = scalar_lea.vmem %s3, %s230
      %s232 = smul.u32 2, %s19
      %p233 = scmp.lt.s32.totalorder %s232, 1
      %s234 = scalar_select %p233, %s232, 1
      %p235 = scmp.lt.s32.totalorder %s21, 0
      %s236 = scalar_select %p235, %s21, 0
      %s237 = sadd.s32 %s236, %s234
      %s238 = smul.addr %s237, 8
      %s239 = scalar_lea.vmem %s0, %s238
      %s240 = smul.u32 2, %s19
      %s241 = smul.u32 4, %s21
      %p242 = scmp.lt.s32.totalorder %s20, 11
      %s243 = scalar_select %p242, %s20, 11
      %p244 = scmp.lt.s32.totalorder %s241, 3
      %s245 = scalar_select %p244, %s241, 3
      %s246 = smul.addr %s243, 4
      %s247 = sadd.s32 %s245, %s246
      %s248 = smul.addr %s247, 4
      %s249 = scalar_lea.vmem %s1, %s248
      %s250 = smul.u32 4, %s21
      %p251 = scmp.lt.s32.totalorder %s20, 11
      %s252 = scalar_select %p251, %s20, 11
      %s253 = scalar_lea.vmem %s2, %s252
      %s254 = smul.u32 2, %s19
      %p255 = scmp.lt.s32.totalorder %s20, 11
      %s256 = scalar_select %p255, %s20, 11
      %p257 = scmp.lt.s32.totalorder %s254, 1
      %s258 = scalar_select %p257, %s254, 1
      %s259 = smul.addr %s256, 2
      %s260 = sadd.s32 %s258, %s259
      %s261 = smul.addr %s260, 4
      %s262 = scalar_lea.vmem %s3, %s261
      %s263 = smul.u32 2, %s19
      %p265 = scmp.eq.s32.totalorder %s21, 0
      // Predicated region
      $region33: #{tpu_custom_call.1} parent=31 // pred_check
        %p266 = pneg %p265
      $region34: #{tpu_custom_call.1} parent=31 // pred_check_branch
        %268 = sbr.rel (%p266) target = $region36
      $region35: #{tpu_custom_call.1} parent=31 // pred_region
        %vm269 = vcmask 64512
        %270 = vst.msk [vmem:[#allocation2] sm:$0xff] %vm269, 0.0
        %271 = vst.msk [vmem:[#allocation2 + $0x8] sm:$0xff] %vm269, 0.0
      $region36: #{tpu_custom_call.1} parent=31 // pred_fallthru
        _
      %v272 = vld [vmem:[#allocation2] sm:$0xff]
      %v273 = vld [vmem:[#allocation2 + $0x8] sm:$0xff]
      %v274 = vld [vmem:[%s239] sm:$0xff]
      %v275 = vld [vmem:[%s239 + $0x8] sm:$0xff]
      %v276 = vpack.c.bf16 %v275, %v274
      %v277 = vld [vmem:[%s249] sm:$0xf]
      %v278 = vld [vmem:[%s249 + $0x4] sm:$0xf]
      %v279 = vld [vmem:[%s249 + $0x8] sm:$0xf]
      %v280 = vld [vmem:[%s249 + $0xc] sm:$0xf]
      %v285 = vunpack.c.l.b16 %v277
      %v286 = vunpack.c.l.b16 %v278
      %v287 = vunpack.c.l.b16 %v279
      %v288 = vunpack.c.l.b16 %v280
      %v289 = vpack.c.b16 %v286, %v285
      %v290 = vpack.c.b16 %v288, %v287
      %vm293 = vcmask 261120
      %v295 = vsel %vm293, %v276, 0
      %297 = vmatprep.subr.bf16.mxu0 0
      %298 = vmatpush1.bf16.msra.mxu0 %v289
      %299 = vmatprep.subr.bf16.mxu0 0
      %300 = vmatpush1.bf16.msra.mxu0 %v290
      %301 = vmatprep.subr.bf16.mxu0 0
      %302 = vmatpush1.bf16.msra.mxu0 0
      %303 = vmatprep.subr.bf16.mxu0 0
      %304 = vmatpush1.bf16.msra.mxu0 0
      %305 = vmatprep.subr.bf16.mxu0 0
      %306 = vmatpush1.bf16.msra.mxu0 0
      %307 = vmatprep.subr.bf16.mxu0 0
      %308 = vmatpush1.bf16.msra.mxu0 0
      %309 = vmatprep.subr.bf16.mxu0 0
      %310 = vmatpush1.bf16.msra.mxu0 0
      %311 = vmatprep.subr.bf16.mxu0 0
      %312 = vmatpush1.bf16.msra.mxu0 0
      %313 = vmatprep.subr.bf16.mxu0 0
      %314 = vmatpush1.bf16.msra.mxu0 0
      %315 = vmatprep.subr.bf16.mxu0 0
      %316 = vmatpush1.bf16.msra.mxu0 0
      %317 = vmatprep.subr.bf16.mxu0 0
      %318 = vmatpush1.bf16.msra.mxu0 0
      %319 = vmatprep.subr.bf16.mxu0 0
      %320 = vmatpush1.bf16.msra.mxu0 0
      %321 = vmatprep.subr.bf16.mxu0 0
      %322 = vmatpush1.bf16.msra.mxu0 0
      %323 = vmatprep.subr.bf16.mxu0 0
      %324 = vmatpush1.bf16.msra.mxu0 0
      %325 = vmatprep.subr.bf16.mxu0 0
      %326 = vmatpush1.bf16.msra.mxu0 0
      %327 = vmatprep.subr.bf16.mxu0 0
      %328 = vmatpush1.bf16.msra.mxu0 0
      %329 = vmatprep.mubr.bf16.mxu0 0
      %330 = vmatmul.mubr.bf16.gmra.mrb[0].mxu0 %v295
      %v331 = vpop.f32.mrb[0].mxu0
      %v332 = vadd.f32 0.0, %v331
      %v333 = vpop.f32.mrb[0].mxu0
      %v334 = vpop.f32.mrb[0].mxu0
      %v335 = vadd.f32 0.0, %v334
      %v336 = vpop.f32.mrb[0].mxu0
      %337 = vdwg.mxu0
      %v338 = vadd.f32 %v272, %v332
      %v339 = vadd.f32 %v273, %v335
      %vm340 = vcmask 64512
      %341 = vst.msk [vmem:[#allocation2] sm:$0xff] %vm340, %v338
      %342 = vst.msk [vmem:[#allocation2 + $0x8] sm:$0xff] %vm340, %v339
      // Predicated region
      $region37: #{tpu_custom_call.1} parent=31 // pred_check
        %p343 = pneg %p265
      $region38: #{tpu_custom_call.1} parent=31 // pred_check_branch
        %345 = sbr.rel (%p343) target = $region40
      $region39: #{tpu_custom_call.1} parent=31 // pred_region
        %v346 = vld [vmem:[#allocation2] sm:$0xff]
        %v347 = vld [vmem:[#allocation2 + $0x8] sm:$0xff]
        %v348 = vld [vmem:[%s253] sm:$0x1]
        %v350 = vlaneseq
        %v351 = vshrl.u32 %v350, 7
        %v352 = vsub.s32 0, %v351
        %v353 = vrot.slane %v348, %v352
        %v355 = vadd.f32 %v346, %v353
        %v356 = vadd.f32 %v347, %v353
        %v357 = vpack.c.bf16 %v356, %v355
        %v359 = vunpack.c.l.b16 %v357
        %v360 = vunpack.c.h.b16 %v357
        %v361 = vpack.c.b16 %v359, %v359
        %v362 = vpack.c.b16 %v360, %v360
        %vm365 = vcmask 60416
        %366 = vst.msk [vmem:[%s262] sm:$0xf] %vm365, %v361
        %367 = vst.msk [vmem:[%s262 + $0x4] sm:$0xf] %vm365, %v362
      $region40: #{tpu_custom_call.1} parent=31 // pred_fallthru
        _
      %s368 = smul.u32 2, %s19
      %p369 = scmp.lt.s32.totalorder %s20, 11
      %s370 = scalar_select %p369, %s20, 11
      %p371 = scmp.lt.s32.totalorder %s368, 1
      %s372 = scalar_select %p371, %s368, 1
      %s373 = smul.addr %s370, 2
      %s374 = sadd.s32 %s372, %s373
      %s375 = smul.addr %s374, 4
      %s376 = scalar_lea.vmem %s3, %s375
      // Predicated region
      $region41: #{tpu_custom_call.1} parent=31 // pred_check
        %p377 = pneg %p135
      $region42: #{tpu_custom_call.1} parent=31 // pred_check_branch
        %379 = sbr.rel (%p377) target = $region44
      $region43: #{tpu_custom_call.1} parent=31 // pred_region
        %s380 = smul.u32 2, %s19
      $region44: #{tpu_custom_call.1} parent=31 // pred_fallthru
        _
    $region32: #{tpu_custom_call.1} parent=5 // pred_fallthru
      _
    %p381 = scmp.le.s32.totalorder 2, %s9
    // Predicated region
    $region45: #{tpu_custom_call.1} parent=5 // pred_check
      %p382 = pneg %p381
    $region46: #{tpu_custom_call.1} parent=5 // pred_check_branch
      %384 = sbr.rel (%p382) target = $region48
    $region47: #{tpu_custom_call.1} parent=5 // pred_region
      %s385 = ssub.s32 %s9, 2
      // Predicated region
      $region49: #{tpu_custom_call.1} parent=47 // pred_check
        %p386 = pneg %p141
      $region50: #{tpu_custom_call.1} parent=47 // pred_check_branch
        %388 = sbr.rel (%p386) target = $region52
      $region51: #{tpu_custom_call.1} parent=47 // pred_region
        %s389 = smul.u32 2, %s22
        %p390 = scmp.lt.s32.totalorder %s23, 11
        %s391 = scalar_select %p390, %s23, 11
        %p392 = scmp.lt.s32.totalorder %s389, 1
        %s393 = scalar_select %p392, %s389, 1
        %s394 = smul.addr %s391, 2
        %s395 = sadd.s32 %s393, %s394
        %s396 = smul.addr %s395, 4
        %s397 = scalar_lea.vmem %s3, %s396
      $region52: #{tpu_custom_call.1} parent=47 // pred_fallthru
        _
    $region48: #{tpu_custom_call.1} parent=5 // pred_fallthru
      _
  $region6: #{tpu_custom_call.1} parent=0 // loop_footer
    %s13 = sadd.s32 1, %s9
  $region7: #{tpu_custom_call.1} parent=0 // loop_footer_branch
    %8 = sbr.rel target = $region3
  $region8: #{tpu_custom_call.1} parent=0 // loop_exit
    _

</llo_original>
